<compile_context>
chip_gen: v7x
topology: tpu7x:2x2x1
jax: 0.10.0
libtpu: 0.0.40
codegen_flags: <defaults>
</compile_context>

<pallas_src>
import functools

import jax
import jax.numpy as jnp
from jax import lax
from jax.experimental import pallas as pl
from jax.experimental.pallas import tpu as pltpu

_LANES = 128
_MIN_GRID = 4                       # give the "parallel" axis >=4 blocks (v7x: 2 TCs)
_MIN_BLOCK_ROWS = 64                # don't split tiny inputs into many sub-µs steps
_TILE_BUDGET_BYTES = 1 << 20        # ~1 MiB per (f32-equivalent) operand tile
_VMEM_LIMIT_BYTES = 32 * 1024 * 1024  # safe on v5e/v6e (128 MiB) and v7x (64 MiB)


def _round_up(x, m):
    return -(-x // m) * m


def _smooth_l1(pred, target, beta):
    diff = jnp.abs(pred - target)
    if beta > 0:
        return jnp.where(diff < beta, (0.5 / beta) * diff * diff, diff - 0.5 * beta)
    return diff


def _partial_sublanes(block_rows):
    return 8 if (block_rows >= 8 and block_rows % 8 == 0) else 1


def _block_partial(loss, block_rows):
    """(block_rows, C) f32 -> (1, psub, C) partial sum.

    For sublane-aligned blocks we keep 8 sublanes: only tile-aligned static
    slices + VPU adds (no in-kernel cross-sublane XLU reduce) and a full-sublane
    store.  The final reduce to a scalar happens in the wrapper.
    """
    if _partial_sublanes(block_rows) == 8:
        acc = loss[0:8]
        for i in range(1, block_rows // 8):
            acc = acc + loss[8 * i:8 * (i + 1)]
        return acc[None]                                    # (1, 8, C)
    return jnp.sum(loss, axis=0, keepdims=True)[None]       # (1, 1, C)


def _weighted_loss(pred_ref, tgt_ref, w_ref, beta):
    loss = _smooth_l1(pred_ref[...].astype(jnp.float32),
                      tgt_ref[...].astype(jnp.float32), beta)
    if w_ref is not None:
        loss = loss * w_ref[...].astype(jnp.float32)        # cast in-kernel, native HBM stream
    return loss


def _partial_sum_kernel(*refs, beta, block_rows, tail_rows, has_weight):
    """Per-block partial sum of the weighted (smooth) L1 loss -> (1, psub, C)."""
    if has_weight:
        pred_ref, tgt_ref, w_ref, out_ref = refs
    else:
        pred_ref, tgt_ref, out_ref = refs
        w_ref = None

    loss = _weighted_loss(pred_ref, tgt_ref, w_ref, beta)

    if tail_rows is None:           # grid divides evenly: no masking anywhere
        out_ref[...] = _block_partial(loss, block_rows)
    else:
        last = pl.num_programs(0) - 1

        @pl.when(pl.program_id(0) != last)
        def _():                    # full blocks: unmasked sum
            out_ref[...] = _block_partial(loss, block_rows)

        @pl.when(pl.program_id(0) == last)
        def _():                    # ragged tail block: zero the OOB rows
            rid = lax.broadcasted_iota(jnp.int32, loss.shape, 0)
            out_ref[...] = _block_partial(
                jnp.where(rid < tail_rows, loss, 0.0), block_rows)


def _elem_kernel(*refs, beta, scale, has_weight):
    """Elementwise (reduction='none') loss with the final scale folded in.

    OOB rows of a ragged last block are computed on unspecified data but the
    corresponding output writes are discarded by Pallas, so no masking needed.
    """
    if has_weight:
        pred_ref, tgt_ref, w_ref, out_ref = refs
    else:
        pred_ref, tgt_ref, out_ref = refs
        w_ref = None
    loss = _weighted_loss(pred_ref, tgt_ref, w_ref, beta)
    out_ref[...] = (loss * scale).astype(out_ref.dtype)


class BGM_L1_MixLoss:
    def __init__(self, reduction='mean', loss_weight=1.0, l1_loss_weight=1.0,
                 beta=0.5, buffer_distance=1.0, buffer_mode='add', pc_range=None,
                 loss_type='kld', fun='log1p', tau=1.0, alpha=1.0, sqrt=True,
                 max_block_rows=2048):
        self.reduction = reduction
        self.loss_weight = loss_weight
        self.l1_loss_weight = l1_loss_weight
        self.beta = beta
        # Parameters of the buffered-gaussian branch, kept for API parity only.
        self.buffer_distance = buffer_distance
        self.buffer_mode = buffer_mode
        self.pc_range = pc_range
        self.loss_type = loss_type
        self.fun = fun
        self.tau = tau
        self.alpha = alpha
        self.sqrt = sqrt
        assert max_block_rows % 8 == 0, "max_block_rows must be sublane-aligned"
        self.max_block_rows = max_block_rows

    # ----- tiling helpers -------------------------------------------------
    def _choose_blocks(self, R, C, align):
        lanes_padded = _round_up(C, _LANES)
        budget_rows = max(align,
                          (_TILE_BUDGET_BYTES // (lanes_padded * 4)) // align * align)
        max_rows = max(align, min(self.max_block_rows, budget_rows))

        desired = _round_up(-(-R // _MIN_GRID), align)          # aim for >= _MIN_GRID blocks
        floor = min(_round_up(R, align), _round_up(_MIN_BLOCK_ROWS, align))
        block_rows = max(align, min(max_rows, max(desired, floor)))

        if block_rows >= R:
            # single block exactly equal to the full extent (no OOB at all)
            return R, 1, None
        grid = -(-R // block_rows)
        ragged = (R % block_rows) != 0
        tail_rows = (R - (grid - 1) * block_rows) if ragged else None
        return block_rows, grid, tail_rows

    # ----- forward ----------------------------------------------------------
    def __call__(self, pred, target, weight=None, avg_factor=None,
                 reduction_override=None):
        assert reduction_override in (None, 'none', 'mean', 'sum')
        reduction = reduction_override if reduction_override else self.reduction
        if avg_factor is not None and reduction != 'mean':
            raise ValueError('avg_factor can only be used with reduction="mean"')

        orig_shape = pred.shape
        orig_dtype = pred.dtype
        d = orig_shape[-1]
        if d < 2:
            raise ValueError('pred last dim must be >= 2 (encodes 2*num_points coords)')
        num_points = d // 2
        numel = pred.size

        # --- copy-free 2-D views (no jnp.pad, no f32 weight copies) ---------
        if numel % _LANES == 0:
            R, C = numel // _LANES, _LANES          # lane-dense fast path (bitcast reshape)
        else:
            R, C = numel // d, d                    # collapse leading dims; last dim = full extent

        has_weight = weight is not None
        operands = [pred.reshape(R, C), target.reshape(R, C)]
        itemsizes = [pred.dtype.itemsize, target.dtype.itemsize]
        if has_weight:
            if weight.shape != orig_shape:
                # materializes once, in native dtype (only when shapes differ)
                weight = jnp.broadcast_to(weight, orig_shape)
            operands.append(weight.reshape(R, C))
            itemsizes.append(weight.dtype.itemsize)

        # dtype-aware sublane alignment: f32 -> 8, bf16 -> 16, int8/fp8 -> 32
        align = max(8, 32 // min(itemsizes))
        block_rows, grid, tail_rows = self._choose_blocks(R, C, align)

        tile_spec = pl.BlockSpec((block_rows, C), lambda i: (i, 0))
        cparams = pltpu.CompilerParams(dimension_semantics=("parallel",),
                                       vmem_limit_bytes=_VMEM_LIMIT_BYTES)

        if reduction == 'none':
            scale = float(self.l1_loss_weight) / num_points
            out = pl.pallas_call(
                functools.partial(_elem_kernel, beta=self.beta, scale=scale,
                                  has_weight=has_weight),
                out_shape=jax.ShapeDtypeStruct((R, C), orig_dtype),
                grid_spec=pltpu.PrefetchScalarGridSpec(
                    num_scalar_prefetch=0, grid=(grid,),
                    in_specs=[tile_spec] * len(operands),
                    out_specs=tile_spec),
                compiler_params=cparams,
            )(*operands)
            loss_l1 = out.reshape(orig_shape)
            # TODO(synk): missing loss_giou * loss_weight term (undefined helper).
            return loss_l1

        psub = _partial_sublanes(block_rows)
        partials = pl.pallas_call(
            functools.partial(_partial_sum_kernel, beta=self.beta,
                              block_rows=block_rows, tail_rows=tail_rows,
                              has_weight=has_weight),
            out_shape=jax.ShapeDtypeStruct((grid, psub, C), jnp.float32),
            grid_spec=pltpu.PrefetchScalarGridSpec(
                num_scalar_prefetch=0, grid=(grid,),
                in_specs=[tile_spec] * len(operands),
                out_specs=pl.BlockSpec((1, psub, C), lambda i: (i, 0, 0))),
            compiler_params=cparams,
        )(*operands)
        total = jnp.sum(partials)

        if avg_factor is not None:
            loss_l1 = total / avg_factor
        elif reduction == 'mean':
            loss_l1 = total / numel
        else:  # 'sum'
            loss_l1 = total
        loss_l1 = loss_l1 / num_points * self.l1_loss_weight
        # TODO(synk): missing loss_giou * loss_weight term (undefined helper).
        return loss_l1.astype(orig_dtype)


def _reference(pred, target, weight, beta, reduction, avg_factor, l1_loss_weight):
    diff = jnp.abs(pred.astype(jnp.float32) - target.astype(jnp.float32))
    if beta > 0:
        elem = jnp.where(diff < beta, 0.5 * diff * diff / beta, diff - 0.5 * beta)
    else:
        elem = diff
    if weight is not None:
        elem = elem * weight.astype(jnp.float32)
    if reduction == 'mean':
        loss = elem.sum() / avg_factor if avg_factor is not None else elem.mean()
    elif reduction == 'sum':
        loss = elem.sum()
    else:
        loss = elem
    return loss / (pred.shape[-1] // 2) * l1_loss_weight


if __name__ == "__main__":
    key = jax.random.PRNGKey(0)
    k = jax.random.split(key, 6)

    # Small shapes consistent with the module: [bs, num_lines, 2*num_points]
    bs, num_lines, num_points = 2, 8, 8
    d = 2 * num_points
    pred = jax.random.normal(k[0], (bs, num_lines, d), jnp.float32)
    target = jax.random.normal(k[1], (bs, num_lines, d), jnp.float32)
    weight = (jax.random.uniform(k[2], (bs, num_lines, d)) > 0.3).astype(jnp.float32)

    loss_mod = BGM_L1_MixLoss(reduction='mean', loss_weight=1.0,
                              l1_loss_weight=1.0, beta=0.5)

    # 1) unweighted mean (lane-dense copy-free view, no-weight kernel variant)
    out = loss_mod(pred, target)
    jax.block_until_ready(out)
    ref = _reference(pred, target, None, 0.5, 'mean', None, 1.0)
    assert jnp.allclose(out, ref, rtol=1e-5, atol=1e-6)

    # 2) weighted sum override
    out = loss_mod(pred, target, weight=weight, reduction_override='sum')
    jax.block_until_ready(out)
    ref = _reference(pred, target, weight, 0.5, 'sum', None, 1.0)
    assert jnp.allclose(out, ref, rtol=1e-5, atol=1e-5)

    # 3) weighted elementwise (reduction='none') path
    out = loss_mod(pred, target, weight=weight, reduction_override='none')
    jax.block_until_ready(out)
    ref = _reference(pred, target, weight, 0.5, 'none', None, 1.0)
    assert jnp.allclose(out, ref, rtol=1e-5, atol=1e-6)

    # 4) weighted mean with avg_factor
    out = loss_mod(pred, target, weight=weight, avg_factor=37.0)
    jax.block_until_ready(out)
    ref = _reference(pred, target, weight, 0.5, 'mean', 37.0, 1.0)
    assert jnp.allclose(out, ref, rtol=1e-5, atol=1e-6)

    # 5) numel not a multiple of 128 -> copy-free (rows, d) fallback view;
    #    small max_block_rows forces a ragged multi-block grid + gated tail mask.
    pred2 = jax.random.normal(k[3], (2, 30, 20), jnp.float32)
    target2 = jax.random.normal(k[4], (2, 30, 20), jnp.float32)
    weight2 = (jax.random.uniform(k[5], (2, 30, 20)) > 0.5).astype(jnp.float32)
    small_mod = BGM_L1_MixLoss(reduction='mean', l1_loss_weight=2.0, beta=0.5,
                               max_block_rows=16)
    out = small_mod(pred2, target2, weight=weight2, reduction_override='sum')
    jax.block_until_ready(out)
    ref = _reference(pred2, target2, weight2, 0.5, 'sum', None, 2.0)
    assert jnp.allclose(out, ref, rtol=1e-5, atol=1e-5)
    out = small_mod(pred2, target2)                      # unweighted mean, ragged grid
    jax.block_until_ready(out)
    ref = _reference(pred2, target2, None, 0.5, 'mean', None, 2.0)
    assert jnp.allclose(out, ref, rtol=1e-5, atol=1e-6)
    out = small_mod(pred2, target2, weight=weight2, reduction_override='none')
    jax.block_until_ready(out)
    ref = _reference(pred2, target2, weight2, 0.5, 'none', None, 2.0)
    assert jnp.allclose(out, ref, rtol=1e-5, atol=1e-6)

    # 6) beta == 0 -> plain L1 branch
    l1_mod = BGM_L1_MixLoss(reduction='mean', l1_loss_weight=1.0, beta=0.0)
    out = l1_mod(pred, target, weight=weight)
    jax.block_until_ready(out)
    ref = _reference(pred, target, weight, 0.0, 'mean', None, 1.0)
    assert jnp.allclose(out, ref, rtol=1e-5, atol=1e-6)

    # 7) bf16 pred/target + f32 weight -> exercises dtype-aware (16-row) alignment
    pred_bf = pred.astype(jnp.bfloat16)
    target_bf = target.astype(jnp.bfloat16)
    out = loss_mod(pred_bf, target_bf, weight=weight, reduction_override='sum')
    jax.block_until_ready(out)
    ref = _reference(pred_bf, target_bf, weight, 0.5, 'sum', None, 1.0)
    assert jnp.allclose(out.astype(jnp.float32), ref, rtol=2e-2, atol=1e-2)

    print("KERNEL_OK")
</pallas_src>

<mosaic_0001>
module attributes {stable_mosaic.version = 11 : i64} {
  func.func @_partial_sum_kernel(%arg0: i32, %arg1: memref<2x128xf32, #tpu.memory_space<vmem>>, %arg2: memref<2x128xf32, #tpu.memory_space<vmem>>, %arg3: memref<1x1x128xf32, #tpu.memory_space<vmem>>) attributes {dimension_semantics = [#tpu.dimension_semantics<parallel>], iteration_bounds = array<i64: 1>, scalar_prefetch = 0 : i64, scratch_operands = 0 : i64, tpu.core_type = #tpu.core_type<tc>, window_params = [{transform_indices = @transform_0, window_bounds = array<i64: 2, 128>}, {transform_indices = @transform_1, window_bounds = array<i64: 2, 128>}, {transform_indices = @transform_2, window_bounds = array<i64: 1, 1, 128>}]} {
    %c0 = arith.constant 0 : index
    %c0_0 = arith.constant 0 : index
    %0 = vector.load %arg1[%c0, %c0_0] : memref<2x128xf32, #tpu.memory_space<vmem>>, vector<2x128xf32>
    %c0_1 = arith.constant 0 : index
    %c0_2 = arith.constant 0 : index
    %1 = vector.load %arg2[%c0_1, %c0_2] : memref<2x128xf32, #tpu.memory_space<vmem>>, vector<2x128xf32>
    %2 = arith.subf %0, %1 : vector<2x128xf32>
    %3 = math.absf %2 : vector<2x128xf32>
    %cst = arith.constant 5.000000e-01 : f32
    %4 = vector.broadcast %cst : f32 to vector<2x128xf32>
    %5 = arith.cmpf olt, %3, %4 : vector<2x128xf32>
    %cst_3 = arith.constant 1.000000e+00 : f32
    %6 = vector.broadcast %cst_3 : f32 to vector<2x128xf32>
    %7 = arith.mulf %6, %3 : vector<2x128xf32>
    %8 = arith.mulf %7, %3 : vector<2x128xf32>
    %cst_4 = arith.constant 2.500000e-01 : f32
    %9 = vector.broadcast %cst_4 : f32 to vector<2x128xf32>
    %10 = arith.subf %3, %9 : vector<2x128xf32>
    %11 = arith.select %5, %8, %10 : vector<2x128xi1>, vector<2x128xf32>
    %cst_5 = arith.constant dense<0.000000e+00> : vector<128xf32>
    %12 = vector.multi_reduction <add>, %11, %cst_5 [0] : vector<2x128xf32> to vector<128xf32>
    %13 = vector.shape_cast %12 : vector<128xf32> to vector<1x128xf32>
    %14 = vector.shape_cast %13 : vector<1x128xf32> to vector<1x1x128xf32>
    %c0_6 = arith.constant 0 : index
    %c0_7 = arith.constant 0 : index
    %c0_8 = arith.constant 0 : index
    %15 = vector.load %arg3[%c0_6, %c0_7, %c0_8] : memref<1x1x128xf32, #tpu.memory_space<vmem>>, vector<1x1x128xf32>
    tpu.vector_store %arg3[%c0_6, %c0_7, %c0_8], %14 {strides = array<i32>} : memref<1x1x128xf32, #tpu.memory_space<vmem>>, vector<1x1x128xf32>,
    return
  }
  func.func @transform_0(%arg0: i32) -> (i32, i32) {
    %c0_i32 = arith.constant 0 : i32
    %c0_i32_0 = arith.constant 0 : i32
    return %arg0, %c0_i32 : i32, i32
  }
  func.func @transform_1(%arg0: i32) -> (i32, i32) {
    %c0_i32 = arith.constant 0 : i32
    %c0_i32_0 = arith.constant 0 : i32
    return %arg0, %c0_i32 : i32, i32
  }
  func.func @transform_2(%arg0: i32) -> (i32, i32, i32) {
    %c0_i32 = arith.constant 0 : i32
    %c0_i32_0 = arith.constant 0 : i32
    %c0_i32_1 = arith.constant 0 : i32
    return %arg0, %c0_i32, %c0_i32_0 : i32, i32, i32
  }
}

</mosaic_0001>

<llo_original>
// kernel: tpu_custom_call.1
$region0: #{tpu_custom_call.1}
  #allocation0 [shape = 'u32[]', space=smem, size = 0x4, offset = 0x4, fixed_abs, tag = 'smem constant byte address 0x4 - core index']
  #allocation1 [shape = 'u32[144,128]{1,0:T(1,128)}', space=vmem, size = 0x12000, scoped, tag = 'internal scratch']
  %s0 = inlined_call_operand.hbm [shape: f32[2,128], index: 0, kind: input, shape index: {}]
  %s1 = inlined_call_operand.vmem [shape: f32[2,128], index: 1, kind: input, shape index: {}]
  %s2 = inlined_call_operand.hbm [shape: f32[1,1,128], index: 2, kind: output, shape index: {}]
  %s3 = sld [smem:[#allocation0]]
  $region22: #{tpu_custom_call.1} parent=0
    _
  %s5 = ssub.s32 1, %s3
  %s6 = scalar_select 0, %s5, %s3
  $region1: #{tpu_custom_call.1} parent=0
    #allocation2 [shape = 'u8[1024]{0}', space=vmem, size = 0x400, scoped, tag = 'input window, operand 0, single buffered']
    #allocation3 [shape = 's32[1]{0}', space=sflag, size = 0x4, scoped, tag = 'scoped memory for tpu_custom_call.1']
    #allocation4 [shape = 's32[1]{0}', space=sflag, size = 0x4, scoped, tag = 'scoped memory for tpu_custom_call.1']
    #allocation5 [shape = 'u8[512]{0}', space=vmem, size = 0x400, scoped, tag = 'output window, operand 0, single buffered']
    %7 = vsyncpa [#allocation3], 0
    %8 = vsyncpa [#allocation4], 0
    // Predicated region
    $region2: #{tpu_custom_call.1} parent=1 // pred_check
      _
    $region3: #{tpu_custom_call.1} parent=1 // pred_check_branch
      %10 = sbr.rel (0) target = $region5
    $region4: #{tpu_custom_call.1} parent=1 // pred_region
      %s12 = ssub.s32 32, 32
      %13 = vsyncadd [#allocation3], %s12
      %s15 = sshll.u32 [#allocation2], 4
      %s16 = int_to_ptr.vmem [resolvable:$true] %s15
      %18 = dma.hbm_to_vmem [thread:$0]  %s0, 32, %s16, [#allocation3]
    $region5: #{tpu_custom_call.1} parent=1 // pred_fallthru
      _
    // Predicated region
    $region6: #{tpu_custom_call.1} parent=1 // pred_check
      _
    $region7: #{tpu_custom_call.1} parent=1 // pred_check_branch
      %20 = sbr.rel (0) target = $region9
    $region8: #{tpu_custom_call.1} parent=1 // pred_region
      _
    $region9: #{tpu_custom_call.1} parent=1 // pred_fallthru
      _
    // Predicated region
    $region10: #{tpu_custom_call.1} parent=1 // pred_check
      _
    $region11: #{tpu_custom_call.1} parent=1 // pred_check_branch
      %22 = sbr.rel (0) target = $region13
    $region12: #{tpu_custom_call.1} parent=1 // pred_region
      %23 = dma.done [#allocation3], 32
    $region13: #{tpu_custom_call.1} parent=1 // pred_fallthru
      _
    %v24 = vld [vmem:[#allocation2] sm:$0x3]
    %v25 = vld [vmem:[%s1] sm:$0x3]
    %v26 = vsub.f32 %v24, %v25
    %v27 = vand.u32 2147483647, %v26
    %vm28 = vcmp.lt.f32.partialorder %v27, 0.5
    %v29 = vmul.f32 %v27, %v27
    %v30 = vsub.f32 %v27, 0.25
    %v31 = vsel %vm28, %v29, %v30
    %vm32 = vcmask 1041408
    %v33 = vsel %vm32, %v31, 0.0
    %v34 = vrot.slane %v33, 4
    %v35 = vadd.f32 %v33, %v34
    %v36 = vrot.slane %v35, 2
    %v37 = vadd.f32 %v35, %v36
    %v38 = vrot.slane %v37, 1
    %v39 = vadd.f32 %v37, %v38
    %40 = vst [vmem:[#allocation5] sm:$0x1] %v39
    // Predicated region
    $region14: #{tpu_custom_call.1} parent=1 // pred_check
      _
    $region15: #{tpu_custom_call.1} parent=1 // pred_check_branch
      %42 = sbr.rel (0) target = $region17
    $region16: #{tpu_custom_call.1} parent=1 // pred_region
      %s44 = ssub.s32 16, 16
      %45 = vsyncadd [#allocation4], %s44
      %s47 = sshll.u32 [#allocation5], 4
      %s48 = int_to_ptr.vmem [resolvable:$true] %s47
      %50 = dma.vmem_to_hbm [thread:$0]  %s48, 16, %s2, [#allocation4]
    $region17: #{tpu_custom_call.1} parent=1 // pred_fallthru
      _
    // Predicated region
    $region18: #{tpu_custom_call.1} parent=1 // pred_check
      _
    $region19: #{tpu_custom_call.1} parent=1 // pred_check_branch
      %52 = sbr.rel (0) target = $region21
    $region20: #{tpu_custom_call.1} parent=1 // pred_region
      %53 = dma.done [#allocation4], 16
    $region21: #{tpu_custom_call.1} parent=1 // pred_fallthru
      _
    %54 = vsyncpa [#allocation3], 1
    %55 = vsyncpa [#allocation4], 1

</llo_original>
